<compile_context>
chip_gen: v7x
topology: tpu7x:2x2x1
jax: 0.10.0
libtpu: 0.0.40
codegen_flags: <defaults>
</compile_context>

<pallas_src>
import functools
import math

import jax
import jax.numpy as jnp
from jax.experimental import pallas as pl
from jax.experimental.pallas import tpu as pltpu


def _elu(x):
    # PyTorch nn.ELU(alpha=1.0): x if x > 0 else exp(x) - 1
    return jnp.where(x > 0, x, jnp.exp(jnp.minimum(x, 0.0)) - 1.0)


def _mlp_kernel(x_ref, *refs, num_layers):
    """refs = (w_0, b_0, w_1, b_1, ..., w_{L-1}, b_{L-1}, o_ref)."""
    o_ref = refs[-1]
    h = x_ref[...]
    for l in range(num_layers):                      # static unroll (shapes differ per layer)
        w = refs[2 * l][...]
        b = refs[2 * l + 1][...]
        h = jnp.dot(h, w, preferred_element_type=jnp.float32) + b
        h = _elu(h)
    o_ref[...] = h.astype(o_ref.dtype)


def _round_up(x, m):
    return (x + m - 1) // m * m


def mlp_forward(x, weights, biases, *, block_m=256):
    """Fused MLP forward: (M, D_in) -> (M, units[-1]) in one pallas_call.

    weights[l] has shape (d_in_l, d_out_l) (i.e. already transposed vs. the
    PyTorch (out, in) Linear layout), biases[l] has shape (d_out_l,).
    """
    assert len(weights) == len(biases) and len(weights) >= 1
    M, d_in = x.shape
    L = len(weights)
    d_out = weights[-1].shape[1]

    # Lane-dense final store: pad last layer's output width to a multiple of 128.
    d_out_p = _round_up(d_out, 128)
    w_last = jnp.pad(weights[-1], ((0, 0), (0, d_out_p - d_out)))
    b_last = jnp.pad(biases[-1], ((0, d_out_p - d_out),))
    weights = list(weights[:-1]) + [w_last]
    biases = list(biases[:-1]) + [b_last]

    # Row tiling: sublane-aligned tiles; whole weight stack broadcast to each tile.
    tm = min(block_m, _round_up(M, 8))
    m_p = _round_up(M, tm)
    x_p = jnp.pad(x.astype(jnp.float32), ((0, m_p - M), (0, 0)))

    in_specs = [pl.BlockSpec((tm, d_in), lambda i: (i, 0))]
    args = [x_p]
    for l in range(L):
        k, n = weights[l].shape
        in_specs.append(pl.BlockSpec((k, n), lambda i: (0, 0)))   # weight (full array)
        in_specs.append(pl.BlockSpec((1, n), lambda i: (0, 0)))   # bias   (full array)
        args.append(weights[l].astype(jnp.float32))
        args.append(biases[l].reshape(1, n).astype(jnp.float32))

    out = pl.pallas_call(
        functools.partial(_mlp_kernel, num_layers=L),
        out_shape=jax.ShapeDtypeStruct((m_p, d_out_p), jnp.float32),
        grid=(m_p // tm,),
        in_specs=in_specs,
        out_specs=pl.BlockSpec((tm, d_out_p), lambda i: (i, 0)),
        compiler_params=pltpu.CompilerParams(
            dimension_semantics=("parallel",),   # batch tiles split across v7x's 2 TCs
        ),
    )(*args)
    return out[:M, :d_out]


# ------------------------------ parameter init ------------------------------

def init_mlp_params(key, input_size, units):
    """Matches nn.Linear default init (uniform +/- 1/sqrt(fan_in)), (in, out) layout."""
    weights, biases = [], []
    d_in = input_size
    for d_out in units:
        key, kw, kb = jax.random.split(key, 3)
        bound = 1.0 / math.sqrt(d_in)
        weights.append(jax.random.uniform(kw, (d_in, d_out), jnp.float32, -bound, bound))
        biases.append(jax.random.uniform(kb, (d_out,), jnp.float32, -bound, bound))
        d_in = d_out
    return weights, biases


# ------------------------------ main ------------------------------

if __name__ == "__main__":
    key = jax.random.PRNGKey(0)
    kp, kx = jax.random.split(key)

    batch, input_size = 2, 32
    units = (64, 64, 32)

    weights, biases = init_mlp_params(kp, input_size, units)
    x = jax.random.normal(kx, (batch, input_size), jnp.float32)

    out = mlp_forward(x, weights, biases)
    out = jax.block_until_ready(out)

    # Plain-JAX reference (same math) for a sanity check.
    ref = x
    for w, b in zip(weights, biases):
        h = jnp.dot(ref, w, preferred_element_type=jnp.float32) + b
        ref = jnp.where(h > 0, h, jnp.exp(jnp.minimum(h, 0.0)) - 1.0)

    assert out.shape == (batch, units[-1]), out.shape
    assert bool(jnp.all(jnp.isfinite(out)))
    assert bool(jnp.allclose(out, ref, atol=1e-3, rtol=1e-3))
    print("KERNEL_OK")
</pallas_src>

<mosaic_0001>
module attributes {stable_mosaic.version = 11 : i64} {
  func.func @_mlp_kernel(%arg0: i32, %arg1: memref<8x32xf32, #tpu.memory_space<vmem>>, %arg2: memref<32x64xf32, #tpu.memory_space<vmem>>, %arg3: memref<1x64xf32, #tpu.memory_space<vmem>>, %arg4: memref<64x64xf32, #tpu.memory_space<vmem>>, %arg5: memref<1x64xf32, #tpu.memory_space<vmem>>, %arg6: memref<64x128xf32, #tpu.memory_space<vmem>>, %arg7: memref<1x128xf32, #tpu.memory_space<vmem>>, %arg8: memref<8x128xf32, #tpu.memory_space<vmem>>) attributes {dimension_semantics = [#tpu.dimension_semantics<parallel>], iteration_bounds = array<i64: 1>, scalar_prefetch = 0 : i64, scratch_operands = 0 : i64, tpu.core_type = #tpu.core_type<tc>, window_params = [{transform_indices = @transform_0, window_bounds = array<i64: 8, 32>}, {pipeline_mode = #tpu.pipeline_mode<synchronous>, transform_indices = @transform_1, window_bounds = array<i64: 32, 64>}, {pipeline_mode = #tpu.pipeline_mode<synchronous>, transform_indices = @transform_2, window_bounds = array<i64: 1, 64>}, {pipeline_mode = #tpu.pipeline_mode<synchronous>, transform_indices = @transform_3, window_bounds = array<i64: 64, 64>}, {pipeline_mode = #tpu.pipeline_mode<synchronous>, transform_indices = @transform_4, window_bounds = array<i64: 1, 64>}, {pipeline_mode = #tpu.pipeline_mode<synchronous>, transform_indices = @transform_5, window_bounds = array<i64: 64, 128>}, {pipeline_mode = #tpu.pipeline_mode<synchronous>, transform_indices = @transform_6, window_bounds = array<i64: 1, 128>}, {transform_indices = @transform_7, window_bounds = array<i64: 8, 128>}]} {
    %c0 = arith.constant 0 : index
    %c0_0 = arith.constant 0 : index
    %0 = vector.load %arg1[%c0, %c0_0] : memref<8x32xf32, #tpu.memory_space<vmem>>, vector<8x32xf32>
    %c0_1 = arith.constant 0 : index
    %c0_2 = arith.constant 0 : index
    %1 = vector.load %arg2[%c0_1, %c0_2] : memref<32x64xf32, #tpu.memory_space<vmem>>, vector<32x64xf32>
    %c0_3 = arith.constant 0 : index
    %c0_4 = arith.constant 0 : index
    %2 = vector.load %arg3[%c0_3, %c0_4] : memref<1x64xf32, #tpu.memory_space<vmem>>, vector<1x64xf32>
    %cst = arith.constant dense<0.000000e+00> : vector<8x64xf32>
    %3 = tpu.matmul %0, %1, %cst {dimension_numbers = #tpu.dot_dimension_numbers<[1], [0], [0], [1], [0, 0, 1, 1], [], []>} : vector<8x32xf32>, vector<32x64xf32>, vector<8x64xf32> -> vector<8x64xf32>
    %4 = vector.broadcast %2 : vector<1x64xf32> to vector<8x64xf32>
    %5 = arith.addf %3, %4 : vector<8x64xf32>
    %cst_5 = arith.constant 0.000000e+00 : f32
    %6 = vector.broadcast %cst_5 : f32 to vector<8x64xf32>
    %7 = arith.cmpf ogt, %5, %6 : vector<8x64xf32>
    %cst_6 = arith.constant 0.000000e+00 : f32
    %8 = vector.broadcast %cst_6 : f32 to vector<8x64xf32>
    %9 = arith.minimumf %5, %8 : vector<8x64xf32>
    %10 = math.exp %9 : vector<8x64xf32>
    %cst_7 = arith.constant 1.000000e+00 : f32
    %11 = vector.broadcast %cst_7 : f32 to vector<8x64xf32>
    %12 = arith.subf %10, %11 : vector<8x64xf32>
    %13 = arith.select %7, %5, %12 : vector<8x64xi1>, vector<8x64xf32>
    %c0_8 = arith.constant 0 : index
    %c0_9 = arith.constant 0 : index
    %14 = vector.load %arg4[%c0_8, %c0_9] : memref<64x64xf32, #tpu.memory_space<vmem>>, vector<64x64xf32>
    %c0_10 = arith.constant 0 : index
    %c0_11 = arith.constant 0 : index
    %15 = vector.load %arg5[%c0_10, %c0_11] : memref<1x64xf32, #tpu.memory_space<vmem>>, vector<1x64xf32>
    %cst_12 = arith.constant dense<0.000000e+00> : vector<8x64xf32>
    %16 = tpu.matmul %13, %14, %cst_12 {dimension_numbers = #tpu.dot_dimension_numbers<[1], [0], [0], [1], [0, 0, 1, 1], [], []>} : vector<8x64xf32>, vector<64x64xf32>, vector<8x64xf32> -> vector<8x64xf32>
    %17 = vector.broadcast %15 : vector<1x64xf32> to vector<8x64xf32>
    %18 = arith.addf %16, %17 : vector<8x64xf32>
    %cst_13 = arith.constant 0.000000e+00 : f32
    %19 = vector.broadcast %cst_13 : f32 to vector<8x64xf32>
    %20 = arith.cmpf ogt, %18, %19 : vector<8x64xf32>
    %cst_14 = arith.constant 0.000000e+00 : f32
    %21 = vector.broadcast %cst_14 : f32 to vector<8x64xf32>
    %22 = arith.minimumf %18, %21 : vector<8x64xf32>
    %23 = math.exp %22 : vector<8x64xf32>
    %cst_15 = arith.constant 1.000000e+00 : f32
    %24 = vector.broadcast %cst_15 : f32 to vector<8x64xf32>
    %25 = arith.subf %23, %24 : vector<8x64xf32>
    %26 = arith.select %20, %18, %25 : vector<8x64xi1>, vector<8x64xf32>
    %c0_16 = arith.constant 0 : index
    %c0_17 = arith.constant 0 : index
    %27 = vector.load %arg6[%c0_16, %c0_17] : memref<64x128xf32, #tpu.memory_space<vmem>>, vector<64x128xf32>
    %c0_18 = arith.constant 0 : index
    %c0_19 = arith.constant 0 : index
    %28 = vector.load %arg7[%c0_18, %c0_19] : memref<1x128xf32, #tpu.memory_space<vmem>>, vector<1x128xf32>
    %cst_20 = arith.constant dense<0.000000e+00> : vector<8x128xf32>
    %29 = tpu.matmul %26, %27, %cst_20 {dimension_numbers = #tpu.dot_dimension_numbers<[1], [0], [0], [1], [0, 0, 1, 1], [], []>} : vector<8x64xf32>, vector<64x128xf32>, vector<8x128xf32> -> vector<8x128xf32>
    %30 = vector.broadcast %28 : vector<1x128xf32> to vector<8x128xf32>
    %31 = arith.addf %29, %30 : vector<8x128xf32>
    %cst_21 = arith.constant 0.000000e+00 : f32
    %32 = vector.broadcast %cst_21 : f32 to vector<8x128xf32>
    %33 = arith.cmpf ogt, %31, %32 : vector<8x128xf32>
    %cst_22 = arith.constant 0.000000e+00 : f32
    %34 = vector.broadcast %cst_22 : f32 to vector<8x128xf32>
    %35 = arith.minimumf %31, %34 : vector<8x128xf32>
    %36 = math.exp %35 : vector<8x128xf32>
    %cst_23 = arith.constant 1.000000e+00 : f32
    %37 = vector.broadcast %cst_23 : f32 to vector<8x128xf32>
    %38 = arith.subf %36, %37 : vector<8x128xf32>
    %39 = arith.select %33, %31, %38 : vector<8x128xi1>, vector<8x128xf32>
    %c0_24 = arith.constant 0 : index
    %c0_25 = arith.constant 0 : index
    %40 = vector.load %arg8[%c0_24, %c0_25] : memref<8x128xf32, #tpu.memory_space<vmem>>, vector<8x128xf32>
    tpu.vector_store %arg8[%c0_24, %c0_25], %39 {strides = array<i32>} : memref<8x128xf32, #tpu.memory_space<vmem>>, vector<8x128xf32>,
    return
  }
  func.func @transform_0(%arg0: i32) -> (i32, i32) {
    %c0_i32 = arith.constant 0 : i32
    %c0_i32_0 = arith.constant 0 : i32
    return %arg0, %c0_i32 : i32, i32
  }
  func.func @transform_1(%arg0: i32) -> (i32, i32) {
    %c0_i32 = arith.constant 0 : i32
    %c0_i32_0 = arith.constant 0 : i32
    %c0_i32_1 = arith.constant 0 : i32
    return %c0_i32, %c0_i32_0 : i32, i32
  }
  func.func @transform_2(%arg0: i32) -> (i32, i32) {
    %c0_i32 = arith.constant 0 : i32
    %c0_i32_0 = arith.constant 0 : i32
    %c0_i32_1 = arith.constant 0 : i32
    return %c0_i32, %c0_i32_0 : i32, i32
  }
  func.func @transform_3(%arg0: i32) -> (i32, i32) {
    %c0_i32 = arith.constant 0 : i32
    %c0_i32_0 = arith.constant 0 : i32
    %c0_i32_1 = arith.constant 0 : i32
    return %c0_i32, %c0_i32_0 : i32, i32
  }
  func.func @transform_4(%arg0: i32) -> (i32, i32) {
    %c0_i32 = arith.constant 0 : i32
    %c0_i32_0 = arith.constant 0 : i32
    %c0_i32_1 = arith.constant 0 : i32
    return %c0_i32, %c0_i32_0 : i32, i32
  }
  func.func @transform_5(%arg0: i32) -> (i32, i32) {
    %c0_i32 = arith.constant 0 : i32
    %c0_i32_0 = arith.constant 0 : i32
    %c0_i32_1 = arith.constant 0 : i32
    return %c0_i32, %c0_i32_0 : i32, i32
  }
  func.func @transform_6(%arg0: i32) -> (i32, i32) {
    %c0_i32 = arith.constant 0 : i32
    %c0_i32_0 = arith.constant 0 : i32
    %c0_i32_1 = arith.constant 0 : i32
    return %c0_i32, %c0_i32_0 : i32, i32
  }
  func.func @transform_7(%arg0: i32) -> (i32, i32) {
    %c0_i32 = arith.constant 0 : i32
    %c0_i32_0 = arith.constant 0 : i32
    return %arg0, %c0_i32 : i32, i32
  }
}

</mosaic_0001>

<llo_original>
// kernel: tpu_custom_call.1
$region0: #{tpu_custom_call.1}
  #allocation0 [shape = 'u32[]', space=smem, size = 0x4, offset = 0x4, fixed_abs, tag = 'smem constant byte address 0x4 - core index']
  #allocation1 [shape = 'u32[144,128]{1,0:T(1,128)}', space=vmem, size = 0x12000, scoped, tag = 'internal scratch']
  %s0 = inlined_call_operand.hbm [shape: f32[8,32], index: 0, kind: input, shape index: {}]
  %s1 = inlined_call_operand.hbm [shape: f32[32,64], index: 1, kind: input, shape index: {}]
  %s2 = inlined_call_operand.vmem [shape: f32[1,64], index: 2, kind: input, shape index: {}]
  %s3 = inlined_call_operand.hbm [shape: f32[64,64], index: 3, kind: input, shape index: {}]
  %s4 = inlined_call_operand.vmem [shape: f32[1,64], index: 4, kind: input, shape index: {}]
  %s5 = inlined_call_operand.hbm [shape: f32[64,128], index: 5, kind: input, shape index: {}]
  %s6 = inlined_call_operand.vmem [shape: f32[1,128], index: 6, kind: input, shape index: {}]
  %s7 = inlined_call_operand.hbm [shape: f32[8,128], index: 7, kind: output, shape index: {}]
  %s8 = sld [smem:[#allocation0]]
  $region54: #{tpu_custom_call.1} parent=0
    _
  %s10 = ssub.s32 1, %s8
  %s11 = scalar_select 0, %s10, %s8
  $region1: #{tpu_custom_call.1} parent=0
    #allocation2 [shape = 'u8[4096]{0}', space=vmem, size = 0x1000, scoped, tag = 'input window, operand 0, single buffered']
    #allocation3 [shape = 's32[1]{0}', space=sflag, size = 0x4, scoped, tag = 'scoped memory for tpu_custom_call.1']
    #allocation4 [shape = 's32[1]{0}', space=sflag, size = 0x4, scoped, tag = 'scoped memory for tpu_custom_call.1']
    #allocation5 [shape = 'u8[16384]{0}', space=vmem, size = 0x4000, scoped, tag = 'input window, operand 1, single buffered']
    #allocation6 [shape = 's32[1]{0}', space=sflag, size = 0x4, scoped, tag = 'scoped memory for tpu_custom_call.1']
    #allocation7 [shape = 'u8[32768]{0}', space=vmem, size = 0x8000, scoped, tag = 'input window, operand 3, single buffered']
    #allocation8 [shape = 'u8[32768]{0}', space=vmem, size = 0x8000, scoped, tag = 'input window, operand 5, single buffered']
    #allocation9 [shape = 's32[1]{0}', space=sflag, size = 0x4, scoped, tag = 'scoped memory for tpu_custom_call.1']
    #allocation10 [shape = 'u8[4096]{0}', space=vmem, size = 0x1000, scoped, tag = 'output window, operand 0, single buffered']
    %12 = vsyncpa [#allocation3], 0
    %13 = vsyncpa [#allocation6], 0
    %14 = vsyncpa [#allocation9], 0
    %15 = vsyncpa [#allocation4], 0
    // Predicated region
    $region2: #{tpu_custom_call.1} parent=1 // pred_check
      _
    $region3: #{tpu_custom_call.1} parent=1 // pred_check_branch
      %17 = sbr.rel (0) target = $region5
    $region4: #{tpu_custom_call.1} parent=1 // pred_region
      %s19 = ssub.s32 128, 128
      %20 = vsyncadd [#allocation3], %s19
      %s22 = sshll.u32 [#allocation2], 4
      %s23 = int_to_ptr.vmem [resolvable:$true] %s22
      %25 = dma.hbm_to_vmem [thread:$0]  %s0, 128, %s23, [#allocation3]
    $region5: #{tpu_custom_call.1} parent=1 // pred_fallthru
      _
    // Predicated region
    $region6: #{tpu_custom_call.1} parent=1 // pred_check
      _
    $region7: #{tpu_custom_call.1} parent=1 // pred_check_branch
      %27 = sbr.rel (0) target = $region9
    $region8: #{tpu_custom_call.1} parent=1 // pred_region
      %s29 = ssub.s32 512, 512
      %30 = vsyncadd [#allocation6], %s29
      %s31 = sshll.u32 [#allocation5], 4
      %s32 = int_to_ptr.vmem [resolvable:$true] %s31
      %37 = dma.hbm_to_vmem [thread:$0]  %s1, 512, %s32, [#allocation6], 128, 128, 8
    $region9: #{tpu_custom_call.1} parent=1 // pred_fallthru
      _
    // Predicated region
    $region10: #{tpu_custom_call.1} parent=1 // pred_check
      _
    $region11: #{tpu_custom_call.1} parent=1 // pred_check_branch
      %39 = sbr.rel (0) target = $region13
    $region12: #{tpu_custom_call.1} parent=1 // pred_region
      _
    $region13: #{tpu_custom_call.1} parent=1 // pred_fallthru
      _
    // Predicated region
    $region14: #{tpu_custom_call.1} parent=1 // pred_check
      _
    $region15: #{tpu_custom_call.1} parent=1 // pred_check_branch
      %41 = sbr.rel (0) target = $region17
    $region16: #{tpu_custom_call.1} parent=1 // pred_region
      %s43 = ssub.s32 1024, 1024
      %44 = vsyncadd [#allocation6], %s43
      %s45 = sshll.u32 [#allocation7], 4
      %s46 = int_to_ptr.vmem [resolvable:$true] %s45
      %51 = dma.hbm_to_vmem [thread:$0]  %s3, 1024, %s46, [#allocation6], 128, 128, 8
    $region17: #{tpu_custom_call.1} parent=1 // pred_fallthru
      _
    // Predicated region
    $region18: #{tpu_custom_call.1} parent=1 // pred_check
      _
    $region19: #{tpu_custom_call.1} parent=1 // pred_check_branch
      %53 = sbr.rel (0) target = $region21
    $region20: #{tpu_custom_call.1} parent=1 // pred_region
      _
    $region21: #{tpu_custom_call.1} parent=1 // pred_fallthru
      _
    // Predicated region
    $region22: #{tpu_custom_call.1} parent=1 // pred_check
      _
    $region23: #{tpu_custom_call.1} parent=1 // pred_check_branch
      %55 = sbr.rel (0) target = $region25
    $region24: #{tpu_custom_call.1} parent=1 // pred_region
      %s57 = ssub.s32 1024, 1024
      %58 = vsyncadd [#allocation9], %s57
      %s59 = sshll.u32 [#allocation8], 4
      %s60 = int_to_ptr.vmem [resolvable:$true] %s59
      %65 = dma.hbm_to_vmem [thread:$0]  %s5, 1024, %s60, [#allocation9], 128, 128, 8
    $region25: #{tpu_custom_call.1} parent=1 // pred_fallthru
      _
    // Predicated region
    $region26: #{tpu_custom_call.1} parent=1 // pred_check
      _
    $region27: #{tpu_custom_call.1} parent=1 // pred_check_branch
      %67 = sbr.rel (0) target = $region29
    $region28: #{tpu_custom_call.1} parent=1 // pred_region
      _
    $region29: #{tpu_custom_call.1} parent=1 // pred_fallthru
      _
    // Predicated region
    $region30: #{tpu_custom_call.1} parent=1 // pred_check
      _
    $region31: #{tpu_custom_call.1} parent=1 // pred_check_branch
      %69 = sbr.rel (0) target = $region33
    $region32: #{tpu_custom_call.1} parent=1 // pred_region
      %70 = dma.done [#allocation3], 128
    $region33: #{tpu_custom_call.1} parent=1 // pred_fallthru
      _
    // Predicated region
    $region34: #{tpu_custom_call.1} parent=1 // pred_check
      _
    $region35: #{tpu_custom_call.1} parent=1 // pred_check_branch
      %72 = sbr.rel (0) target = $region37
    $region36: #{tpu_custom_call.1} parent=1 // pred_region
      %73 = dma.done [#allocation6], 512
    $region37: #{tpu_custom_call.1} parent=1 // pred_fallthru
      _
    // Predicated region
    $region38: #{tpu_custom_call.1} parent=1 // pred_check
      _
    $region39: #{tpu_custom_call.1} parent=1 // pred_check_branch
      %75 = sbr.rel (0) target = $region41
    $region40: #{tpu_custom_call.1} parent=1 // pred_region
      %76 = dma.done [#allocation6], 1024
    $region41: #{tpu_custom_call.1} parent=1 // pred_fallthru
      _
    // Predicated region
    $region42: #{tpu_custom_call.1} parent=1 // pred_check
      _
    $region43: #{tpu_custom_call.1} parent=1 // pred_check_branch
      %78 = sbr.rel (0) target = $region45
    $region44: #{tpu_custom_call.1} parent=1 // pred_region
      %79 = dma.done [#allocation9], 1024
    $region45: #{tpu_custom_call.1} parent=1 // pred_fallthru
      _
    %v80 = vld [vmem:[#allocation2] sm:$0xff]
    %v81 = vld [vmem:[#allocation5] sm:$0xff]
    %v82 = vld [vmem:[#allocation5 + $0x8] sm:$0xff]
    %v83 = vld [vmem:[#allocation5 + $0x10] sm:$0xff]
    %v84 = vld [vmem:[#allocation5 + $0x18] sm:$0xff]
    %v85 = vld [vmem:[%s2] sm:$0x1]
    %v87 = vlaneseq
    %v88 = vshrl.u32 %v87, 7
    %v89 = vsub.s32 0, %v88
    %v90 = vrot.slane %v85, %v89
    %vm92 = vcmask 261120
    %v94 = vsel %vm92, %v80, 0
    %96 = vmatprep.subr.mxu0 0.0
    %97 = vmatpush1.msra.mxu0 %v81
    %98 = vmatprep.subr.mxu0 0.0
    %99 = vmatpush1.msra.mxu0 %v82
    %100 = vmatprep.subr.mxu0 0.0
    %101 = vmatpush1.msra.mxu0 %v83
    %102 = vmatprep.subr.mxu0 0.0
    %103 = vmatpush1.msra.mxu0 %v84
    %104 = vmatprep.subr.mxu0 0.0
    %105 = vmatpush1.msra.mxu0 0.0
    %106 = vmatprep.subr.mxu0 0.0
    %107 = vmatpush1.msra.mxu0 0.0
    %108 = vmatprep.subr.mxu0 0.0
    %109 = vmatpush1.msra.mxu0 0.0
    %110 = vmatprep.subr.mxu0 0.0
    %111 = vmatpush1.msra.mxu0 0.0
    %112 = vmatprep.subr.mxu0 0.0
    %113 = vmatpush1.msra.mxu0 0.0
    %114 = vmatprep.subr.mxu0 0.0
    %115 = vmatpush1.msra.mxu0 0.0
    %116 = vmatprep.subr.mxu0 0.0
    %117 = vmatpush1.msra.mxu0 0.0
    %118 = vmatprep.subr.mxu0 0.0
    %119 = vmatpush1.msra.mxu0 0.0
    %120 = vmatprep.subr.mxu0 0.0
    %121 = vmatpush1.msra.mxu0 0.0
    %122 = vmatprep.subr.mxu0 0.0
    %123 = vmatpush1.msra.mxu0 0.0
    %124 = vmatprep.subr.mxu0 0.0
    %125 = vmatpush1.msra.mxu0 0.0
    %126 = vmatprep.subr.mxu0 0.0
    %127 = vmatpush1.msra.mxu0 0.0
    %128 = vmatprep.subr.mxu0 0.0
    %129 = vmatpush1.msra.mxu0 0.0
    %130 = vmatprep.subr.mxu0 0.0
    %131 = vmatpush1.msra.mxu0 0.0
    %132 = vmatprep.subr.mxu0 0.0
    %133 = vmatpush1.msra.mxu0 0.0
    %134 = vmatprep.subr.mxu0 0.0
    %135 = vmatpush1.msra.mxu0 0.0
    %136 = vmatprep.subr.mxu0 0.0
    %137 = vmatpush1.msra.mxu0 0.0
    %138 = vmatprep.subr.mxu0 0.0
    %139 = vmatpush1.msra.mxu0 0.0
    %140 = vmatprep.subr.mxu0 0.0
    %141 = vmatpush1.msra.mxu0 0.0
    %142 = vmatprep.subr.mxu0 0.0
    %143 = vmatpush1.msra.mxu0 0.0
    %144 = vmatprep.subr.mxu0 0.0
    %145 = vmatpush1.msra.mxu0 0.0
    %146 = vmatprep.subr.mxu0 0.0
    %147 = vmatpush1.msra.mxu0 0.0
    %148 = vmatprep.subr.mxu0 0.0
    %149 = vmatpush1.msra.mxu0 0.0
    %150 = vmatprep.subr.mxu0 0.0
    %151 = vmatpush1.msra.mxu0 0.0
    %152 = vmatprep.subr.mxu0 0.0
    %153 = vmatpush1.msra.mxu0 0.0
    %154 = vmatprep.subr.mxu0 0.0
    %155 = vmatpush1.msra.mxu0 0.0
    %156 = vmatprep.subr.mxu0 0.0
    %157 = vmatpush1.msra.mxu0 0.0
    %158 = vmatprep.subr.mxu0 0.0
    %159 = vmatpush1.msra.mxu0 0.0
    %160 = vmatprep.mubr.f32.mxu0 0.0
    %161 = vmatmul.mubr.f32.gmra.mrb[0].mxu0 %v94
    %v162 = vpop.f32.mrb[0].mxu0
    %v163 = vadd.f32 %v90, %v162
    %v164 = vpop.f32.mrb[0].mxu0
    %165 = vdwg.mxu0
    %vm166 = vcmp.gt.f32.partialorder %v163, 0.0
    %v167 = vmin.f32 %v163, 0.0
    %v168 = vmul.f32 %v167, 1.442695
    %v169 = vpow.pop %v168
    %v170 = vsub.f32 %v169, 1.0
    %v171 = vsel %vm166, %v163, %v170
    %v172 = vld [vmem:[#allocation7] sm:$0xff]
    %v173 = vld [vmem:[#allocation7 + $0x8] sm:$0xff]
    %v174 = vld [vmem:[#allocation7 + $0x10] sm:$0xff]
    %v175 = vld [vmem:[#allocation7 + $0x18] sm:$0xff]
    %v176 = vld [vmem:[#allocation7 + $0x20] sm:$0xff]
    %v177 = vld [vmem:[#allocation7 + $0x28] sm:$0xff]
    %v178 = vld [vmem:[#allocation7 + $0x30] sm:$0xff]
    %v179 = vld [vmem:[#allocation7 + $0x38] sm:$0xff]
    %v180 = vld [vmem:[%s4] sm:$0x1]
    %v182 = vlaneseq
    %v183 = vshrl.u32 %v182, 7
    %v184 = vsub.s32 0, %v183
    %v185 = vrot.slane %v180, %v184
    %vm187 = vcmask 523264
    %v189 = vsel %vm187, %v171, 0
    %191 = vmatprep.subr.mxu0 0.0
    %192 = vmatpush1.msra.mxu0 %v172
    %193 = vmatprep.subr.mxu0 0.0
    %194 = vmatpush1.msra.mxu0 %v173
    %195 = vmatprep.subr.mxu0 0.0
    %196 = vmatpush1.msra.mxu0 %v174
    %197 = vmatprep.subr.mxu0 0.0
    %198 = vmatpush1.msra.mxu0 %v175
    %199 = vmatprep.subr.mxu0 0.0
    %200 = vmatpush1.msra.mxu0 %v176
    %201 = vmatprep.subr.mxu0 0.0
    %202 = vmatpush1.msra.mxu0 %v177
    %203 = vmatprep.subr.mxu0 0.0
    %204 = vmatpush1.msra.mxu0 %v178
    %205 = vmatprep.subr.mxu0 0.0
    %206 = vmatpush1.msra.mxu0 %v179
    %207 = vmatprep.subr.mxu0 0.0
    %208 = vmatpush1.msra.mxu0 0.0
    %209 = vmatprep.subr.mxu0 0.0
    %210 = vmatpush1.msra.mxu0 0.0
    %211 = vmatprep.subr.mxu0 0.0
    %212 = vmatpush1.msra.mxu0 0.0
    %213 = vmatprep.subr.mxu0 0.0
    %214 = vmatpush1.msra.mxu0 0.0
    %215 = vmatprep.subr.mxu0 0.0
    %216 = vmatpush1.msra.mxu0 0.0
    %217 = vmatprep.subr.mxu0 0.0
    %218 = vmatpush1.msra.mxu0 0.0
    %219 = vmatprep.subr.mxu0 0.0
    %220 = vmatpush1.msra.mxu0 0.0
    %221 = vmatprep.subr.mxu0 0.0
    %222 = vmatpush1.msra.mxu0 0.0
    %223 = vmatprep.subr.mxu0 0.0
    %224 = vmatpush1.msra.mxu0 0.0
    %225 = vmatprep.subr.mxu0 0.0
    %226 = vmatpush1.msra.mxu0 0.0
    %227 = vmatprep.subr.mxu0 0.0
    %228 = vmatpush1.msra.mxu0 0.0
    %229 = vmatprep.subr.mxu0 0.0
    %230 = vmatpush1.msra.mxu0 0.0
    %231 = vmatprep.subr.mxu0 0.0
    %232 = vmatpush1.msra.mxu0 0.0
    %233 = vmatprep.subr.mxu0 0.0
    %234 = vmatpush1.msra.mxu0 0.0
    %235 = vmatprep.subr.mxu0 0.0
    %236 = vmatpush1.msra.mxu0 0.0
    %237 = vmatprep.subr.mxu0 0.0
    %238 = vmatpush1.msra.mxu0 0.0
    %239 = vmatprep.subr.mxu0 0.0
    %240 = vmatpush1.msra.mxu0 0.0
    %241 = vmatprep.subr.mxu0 0.0
    %242 = vmatpush1.msra.mxu0 0.0
    %243 = vmatprep.subr.mxu0 0.0
    %244 = vmatpush1.msra.mxu0 0.0
    %245 = vmatprep.subr.mxu0 0.0
    %246 = vmatpush1.msra.mxu0 0.0
    %247 = vmatprep.subr.mxu0 0.0
    %248 = vmatpush1.msra.mxu0 0.0
    %249 = vmatprep.subr.mxu0 0.0
    %250 = vmatpush1.msra.mxu0 0.0
    %251 = vmatprep.subr.mxu0 0.0
    %252 = vmatpush1.msra.mxu0 0.0
    %253 = vmatprep.subr.mxu0 0.0
    %254 = vmatpush1.msra.mxu0 0.0
    %255 = vmatprep.mubr.f32.mxu0 0.0
    %256 = vmatmul.mubr.f32.gmra.mrb[0].mxu0 %v189
    %v257 = vpop.f32.mrb[0].mxu0
    %v258 = vadd.f32 %v185, %v257
    %v259 = vpop.f32.mrb[0].mxu0
    %260 = vdwg.mxu0
    %vm261 = vcmp.gt.f32.partialorder %v258, 0.0
    %v262 = vmin.f32 %v258, 0.0
    %v263 = vmul.f32 %v262, 1.442695
    %v264 = vpow.pop %v263
    %v265 = vsub.f32 %v264, 1.0
    %v266 = vsel %vm261, %v258, %v265
    %v267 = vld [vmem:[#allocation8] sm:$0xff]
    %v268 = vld [vmem:[#allocation8 + $0x8] sm:$0xff]
    %v269 = vld [vmem:[#allocation8 + $0x10] sm:$0xff]
    %v270 = vld [vmem:[#allocation8 + $0x18] sm:$0xff]
    %v271 = vld [vmem:[#allocation8 + $0x20] sm:$0xff]
    %v272 = vld [vmem:[#allocation8 + $0x28] sm:$0xff]
    %v273 = vld [vmem:[#allocation8 + $0x30] sm:$0xff]
    %v274 = vld [vmem:[#allocation8 + $0x38] sm:$0xff]
    %v275 = vld [vmem:[%s6] sm:$0x1]
    %v277 = vlaneseq
    %v278 = vshrl.u32 %v277, 7
    %v279 = vsub.s32 0, %v278
    %v280 = vrot.slane %v275, %v279
    %v283 = vsel %vm187, %v266, 0
    %285 = vmatprep.subr.mxu0 0.0
    %286 = vmatpush1.msra.mxu0 %v267
    %287 = vmatprep.subr.mxu0 0.0
    %288 = vmatpush1.msra.mxu0 %v268
    %289 = vmatprep.subr.mxu0 0.0
    %290 = vmatpush1.msra.mxu0 %v269
    %291 = vmatprep.subr.mxu0 0.0
    %292 = vmatpush1.msra.mxu0 %v270
    %293 = vmatprep.subr.mxu0 0.0
    %294 = vmatpush1.msra.mxu0 %v271
    %295 = vmatprep.subr.mxu0 0.0
    %296 = vmatpush1.msra.mxu0 %v272
    %297 = vmatprep.subr.mxu0 0.0
    %298 = vmatpush1.msra.mxu0 %v273
    %299 = vmatprep.subr.mxu0 0.0
    %300 = vmatpush1.msra.mxu0 %v274
    %301 = vmatprep.subr.mxu0 0.0
    %302 = vmatpush1.msra.mxu0 0.0
    %303 = vmatprep.subr.mxu0 0.0
    %304 = vmatpush1.msra.mxu0 0.0
    %305 = vmatprep.subr.mxu0 0.0
    %306 = vmatpush1.msra.mxu0 0.0
    %307 = vmatprep.subr.mxu0 0.0
    %308 = vmatpush1.msra.mxu0 0.0
    %309 = vmatprep.subr.mxu0 0.0
    %310 = vmatpush1.msra.mxu0 0.0
    %311 = vmatprep.subr.mxu0 0.0
    %312 = vmatpush1.msra.mxu0 0.0
    %313 = vmatprep.subr.mxu0 0.0
    %314 = vmatpush1.msra.mxu0 0.0
    %315 = vmatprep.subr.mxu0 0.0
    %316 = vmatpush1.msra.mxu0 0.0
    %317 = vmatprep.subr.mxu0 0.0
    %318 = vmatpush1.msra.mxu0 0.0
    %319 = vmatprep.subr.mxu0 0.0
    %320 = vmatpush1.msra.mxu0 0.0
    %321 = vmatprep.subr.mxu0 0.0
    %322 = vmatpush1.msra.mxu0 0.0
    %323 = vmatprep.subr.mxu0 0.0
    %324 = vmatpush1.msra.mxu0 0.0
    %325 = vmatprep.subr.mxu0 0.0
    %326 = vmatpush1.msra.mxu0 0.0
    %327 = vmatprep.subr.mxu0 0.0
    %328 = vmatpush1.msra.mxu0 0.0
    %329 = vmatprep.subr.mxu0 0.0
    %330 = vmatpush1.msra.mxu0 0.0
    %331 = vmatprep.subr.mxu0 0.0
    %332 = vmatpush1.msra.mxu0 0.0
    %333 = vmatprep.subr.mxu0 0.0
    %334 = vmatpush1.msra.mxu0 0.0
    %335 = vmatprep.subr.mxu0 0.0
    %336 = vmatpush1.msra.mxu0 0.0
    %337 = vmatprep.subr.mxu0 0.0
    %338 = vmatpush1.msra.mxu0 0.0
    %339 = vmatprep.subr.mxu0 0.0
    %340 = vmatpush1.msra.mxu0 0.0
    %341 = vmatprep.subr.mxu0 0.0
    %342 = vmatpush1.msra.mxu0 0.0
    %343 = vmatprep.subr.mxu0 0.0
    %344 = vmatpush1.msra.mxu0 0.0
    %345 = vmatprep.subr.mxu0 0.0
    %346 = vmatpush1.msra.mxu0 0.0
    %347 = vmatprep.subr.mxu0 0.0
    %348 = vmatpush1.msra.mxu0 0.0
    %349 = vmatprep.mubr.f32.mxu0 0.0
    %350 = vmatmul.mubr.f32.gmra.mrb[0].mxu0 %v283
    %v351 = vpop.f32.mrb[0].mxu0
    %v352 = vadd.f32 %v280, %v351
    %v353 = vpop.f32.mrb[0].mxu0
    %354 = vdwg.mxu0
    %vm355 = vcmp.gt.f32.partialorder %v352, 0.0
    %v356 = vmin.f32 %v352, 0.0
    %v357 = vmul.f32 %v356, 1.442695
    %v358 = vpow.pop %v357
    %v359 = vsub.f32 %v358, 1.0
    %v360 = vsel %vm355, %v352, %v359
    %361 = vst [vmem:[#allocation10] sm:$0xff] %v360
    // Predicated region
    $region46: #{tpu_custom_call.1} parent=1 // pred_check
      _
    $region47: #{tpu_custom_call.1} parent=1 // pred_check_branch
      %363 = sbr.rel (0) target = $region49
    $region48: #{tpu_custom_call.1} parent=1 // pred_region
      %s365 = ssub.s32 128, 128
      %366 = vsyncadd [#allocation4], %s365
      %s368 = sshll.u32 [#allocation10], 4
      %s369 = int_to_ptr.vmem [resolvable:$true] %s368
      %371 = dma.vmem_to_hbm [thread:$0]  %s369, 128, %s7, [#allocation4]
    $region49: #{tpu_custom_call.1} parent=1 // pred_fallthru
      _
    // Predicated region
    $region50: #{tpu_custom_call.1} parent=1 // pred_check
      _
    $region51: #{tpu_custom_call.1} parent=1 // pred_check_branch
      %373 = sbr.rel (0) target = $region53
    $region52: #{tpu_custom_call.1} parent=1 // pred_region
      %374 = dma.done [#allocation4], 128
    $region53: #{tpu_custom_call.1} parent=1 // pred_fallthru
      _
    %375 = vsyncpa [#allocation3], 1
    %376 = vsyncpa [#allocation6], 1
    %377 = vsyncpa [#allocation9], 1
    %378 = vsyncpa [#allocation4], 1

</llo_original>
